<compile_context>
chip_gen: v7x
topology: tpu7x:2x2x1
jax: 0.10.0
libtpu: 0.0.40
codegen_flags: <defaults>
</compile_context>

<pallas_src>
import functools

import jax
import jax.numpy as jnp
from jax.experimental import pallas as pl
from jax.experimental.pallas import tpu as pltpu


def _attention_kernel(enc_ref, hid_ref, we_t_ref, wh_t_ref, b_ref, v_ref, o_ref,
                      *, approx_recip):
    # enc_ref : (T, Bt, H)  seq-first encoder block (torch layout, no HBM transpose)
    # hid_ref : (Bt, H)     decoder hidden state for this batch tile
    # we_t_ref: (H, H)      encoder half of attn.weight, transposed (resident)
    # wh_t_ref: (H, H)      hidden  half of attn.weight, transposed (resident)
    # b_ref   : (1, H)      attn.bias (f32)
    # v_ref   : (1, H)      scoring vector (f32)
    # o_ref   : (Bt, T)     softmax attention weights (lane-dense over T)
    T, Bt, H = enc_ref.shape
    mxu_dtype = we_t_ref.dtype

    # Encoder projection: one flattened (T*Bt, H) @ (H, H) MXU matmul, f32 acc.
    # The wrapper keeps Bt a multiple of 8, so this reshape is layout-trivial.
    enc2 = enc_ref[...].reshape(T * Bt, H).astype(mxu_dtype)
    e = jnp.dot(enc2, we_t_ref[...], preferred_element_type=jnp.float32)   # (T*Bt, H)

    # Hidden projection + bias: computed once per batch row, broadcast over T.
    hp = jnp.dot(hid_ref[...].astype(mxu_dtype), wh_t_ref[...],
                 preferred_element_type=jnp.float32) + b_ref[...]          # (Bt, H)

    e = e.reshape(T, Bt, H) + hp[None, :, :]
    e = jnp.maximum(e, 0.0)                                                # ReLU (f32 VPU)

    # score = v . energy along H: VPU multiply + lane reduce (no M=1 MXU pass).
    score_tb = jnp.sum(e * v_ref[...][None, :, :], axis=-1)                # (T, Bt)
    score = score_tb.T                                # tiny XLU transpose -> (Bt, T)

    # Softmax over T (lane axis), f32 throughout.
    m = jnp.max(score, axis=-1, keepdims=True)
    p = jnp.exp(score - m)
    denom = jnp.sum(p, axis=-1, keepdims=True)
    if approx_recip:
        out = p * pl.reciprocal(denom, approx=True)   # EUP slot, effectively free
    else:
        out = p / denom                               # exact division (f32 check path)
    o_ref[...] = out.astype(o_ref.dtype)


def _vmem_budget_bytes():
    """Per-core VMEM budget: ~48 MiB on v7x (64 MiB physical), ~96 MiB on v5e/v6e."""
    try:
        cap = int(getattr(pltpu.get_tpu_info(), "vmem_capacity_bytes",
                          64 * 1024 * 1024))
    except Exception:
        cap = 64 * 1024 * 1024
    return min((cap * 3) // 4, 100 * 1024 * 1024)


def _pick_block_b(B, T, H, *, budget_bytes, enc_bytes, mxu_bytes):
    """Largest batch tile whose VMEM footprint fits the budget.

    Legal tiles: bt == B, or bt % 8 == 0 and bt divides B (sublane rule on the
    (T, bt, H) / (bt, T) blocks). Prefers >= 2 grid steps when B allows so both
    v7x TensorCores get work on the 'parallel' batch axis.
    """
    # TODO(synk): a single batch row with huge T*H still has to fit VMEM; an
    # online-softmax T-tiled variant would be needed beyond that point.
    resident = 2 * H * H * mxu_bytes + 4 * H * 4 + (2 << 20)   # weights + bias/v + slack
    per_row = (2 * T * H * enc_bytes        # double-buffered encoder block
               + 2 * H * 4 + 2 * T * 4      # hidden + output blocks
               + T * H * (4 + mxu_bytes))   # in-kernel f32 energy + MXU-dtype copy
    avail = max(budget_bytes - resident, per_row)

    cands = sorted({B, *[m for m in range(8, B, 8) if B % m == 0]}, reverse=True)
    fitting = [c for c in cands if c * per_row <= avail] or [min(cands)]
    bt = fitting[0]
    if bt == B and B >= 16 and len(fitting) > 1:
        bt = fitting[1]          # guarantee >= 2 grid steps for megacore sharding
    return bt


def attention_forward(hidden, encoder_outputs, weight, bias, v, *, use_bf16_mxu=True):
    """hidden: (B, H); encoder_outputs: (T, B, H); weight: (H, 2H); bias: (H,); v: (H,)
    Returns (B, 1, T) softmax attention weights (matches the torch module)."""
    T, B, H = encoder_outputs.shape
    orig_B = B

    # Tiny batches: pad up to one 8-row sublane tile so in-kernel reshapes/stores
    # stay layout-trivial. Only taken when B < 8, so the copy is negligible.
    if B < 8:
        pad = 8 - B
        encoder_outputs = jnp.pad(encoder_outputs, ((0, 0), (0, pad), (0, 0)))
        hidden = jnp.pad(hidden, ((0, pad), (0, 0)))
        B = 8

    # Split the linear weight: cat([h, enc]) @ W.T == h @ W_h.T + enc @ W_e.T
    mxu_dtype = jnp.bfloat16 if use_bf16_mxu else jnp.float32
    wh_t = weight[:, :H].T.astype(mxu_dtype)         # (H, H)
    we_t = weight[:, H:].T.astype(mxu_dtype)         # (H, H)
    b2 = bias.reshape(1, H).astype(jnp.float32)
    v2 = v.reshape(1, H).astype(jnp.float32)

    budget = _vmem_budget_bytes()
    bt = _pick_block_b(B, T, H, budget_bytes=budget,
                       enc_bytes=encoder_outputs.dtype.itemsize,
                       mxu_bytes=jnp.dtype(mxu_dtype).itemsize)
    grid = (B // bt,)

    resident = dict(pipeline_mode=pl.Buffered(1))    # grid-invariant: single buffer
    grid_spec = pltpu.PrefetchScalarGridSpec(
        num_scalar_prefetch=0,
        grid=grid,
        in_specs=[
            # Encoder read straight from the (T, B, H) layout: no HBM transpose.
            pl.BlockSpec((T, bt, H), lambda i: (0, i, 0)),
            pl.BlockSpec((bt, H), lambda i: (i, 0)),           # hidden
            pl.BlockSpec((H, H), lambda i: (0, 0), **resident),  # W_e^T
            pl.BlockSpec((H, H), lambda i: (0, 0), **resident),  # W_h^T
            pl.BlockSpec((1, H), lambda i: (0, 0), **resident),  # bias
            pl.BlockSpec((1, H), lambda i: (0, 0), **resident),  # v
        ],
        out_specs=pl.BlockSpec((bt, T), lambda i: (i, 0)),     # lane-dense over T
    )

    scores = pl.pallas_call(
        functools.partial(_attention_kernel, approx_recip=use_bf16_mxu),
        out_shape=jax.ShapeDtypeStruct((B, T), jnp.float32),
        grid_spec=grid_spec,
        compiler_params=pltpu.CompilerParams(
            dimension_semantics=("parallel",),       # batch tiles shard across TCs on v7x
            vmem_limit_bytes=int(budget),
        ),
    )(encoder_outputs, hidden, we_t, wh_t, b2, v2)

    return scores[:orig_B, None, :]                  # (B, 1, T); unsqueeze is free metadata


def _reference(hidden, encoder_outputs, weight, bias, v):
    T, B, H = encoder_outputs.shape
    enc = jnp.transpose(encoder_outputs, (1, 0, 2))             # (B, T, H)
    h = jnp.broadcast_to(hidden[:, None, :], (B, T, H))
    cat = jnp.concatenate([h, enc], axis=-1)                    # (B, T, 2H)
    energy = jax.nn.relu(jnp.einsum("bte,he->bth", cat, weight) + bias)
    score = jnp.einsum("bth,h->bt", energy, v)                  # (B, T)
    return jax.nn.softmax(score, axis=1)[:, None, :]            # (B, 1, T)


if __name__ == "__main__":
    B, T, H = 2, 8, 32
    key = jax.random.PRNGKey(0)
    k1, k2, k3, k4, k5 = jax.random.split(key, 5)

    # Deterministic "parameters" (shapes match nn.Linear(2H, H) and nn.Parameter(H))
    stdv = 1.0 / (2 * H) ** 0.5
    weight = jax.random.uniform(k1, (H, 2 * H), jnp.float32, -stdv, stdv)
    bias = jax.random.uniform(k2, (H,), jnp.float32, -stdv, stdv)
    v_stdv = 1.0 / H ** 0.5
    v = jax.random.uniform(k3, (H,), jnp.float32, -v_stdv, v_stdv)

    # Inputs
    hidden = jax.random.normal(k4, (B, H), jnp.float32)
    encoder_outputs = jax.random.normal(k5, (T, B, H), jnp.float32)

    ref = _reference(hidden, encoder_outputs, weight, bias, v)

    # Exact-f32 MXU path + exact division: tight check against the f32 reference.
    out_f32 = jax.block_until_ready(
        attention_forward(hidden, encoder_outputs, weight, bias, v, use_bf16_mxu=False))
    assert out_f32.shape == (B, 1, T), out_f32.shape
    assert jnp.allclose(out_f32, ref, atol=1e-5, rtol=1e-5), "f32 path mismatch vs reference"

    # Default fast path (bf16 MXU operands, f32 accumulate, approx reciprocal).
    out = jax.block_until_ready(
        attention_forward(hidden, encoder_outputs, weight, bias, v))
    assert out.shape == (B, 1, T), out.shape
    assert jnp.allclose(out, ref, atol=2e-2, rtol=2e-2), "bf16 path mismatch vs reference"

    print("KERNEL_OK")
</pallas_src>

<mosaic_0001>
module attributes {stable_mosaic.version = 11 : i64} {
  func.func @_attention_kernel(%arg0: i32, %arg1: memref<8x8x32xf32, #tpu.memory_space<vmem>>, %arg2: memref<8x32xf32, #tpu.memory_space<vmem>>, %arg3: memref<32x32xf32, #tpu.memory_space<vmem>>, %arg4: memref<32x32xf32, #tpu.memory_space<vmem>>, %arg5: memref<1x32xf32, #tpu.memory_space<vmem>>, %arg6: memref<1x32xf32, #tpu.memory_space<vmem>>, %arg7: memref<8x8xf32, #tpu.memory_space<vmem>>) attributes {dimension_semantics = [#tpu.dimension_semantics<parallel>], iteration_bounds = array<i64: 1>, scalar_prefetch = 0 : i64, scratch_operands = 0 : i64, tpu.core_type = #tpu.core_type<tc>, window_params = [{transform_indices = @transform_0, window_bounds = array<i64: 8, 8, 32>}, {transform_indices = @transform_1, window_bounds = array<i64: 8, 32>}, {pipeline_mode = #tpu.pipeline_mode<synchronous>, transform_indices = @transform_2, window_bounds = array<i64: 32, 32>}, {pipeline_mode = #tpu.pipeline_mode<synchronous>, transform_indices = @transform_3, window_bounds = array<i64: 32, 32>}, {pipeline_mode = #tpu.pipeline_mode<synchronous>, transform_indices = @transform_4, window_bounds = array<i64: 1, 32>}, {pipeline_mode = #tpu.pipeline_mode<synchronous>, transform_indices = @transform_5, window_bounds = array<i64: 1, 32>}, {transform_indices = @transform_6, window_bounds = array<i64: 8, 8>}]} {
    %c0 = arith.constant 0 : index
    %c0_0 = arith.constant 0 : index
    %c0_1 = arith.constant 0 : index
    %0 = vector.load %arg1[%c0, %c0_0, %c0_1] : memref<8x8x32xf32, #tpu.memory_space<vmem>>, vector<8x8x32xf32>
    %1 = vector.shape_cast %0 : vector<8x8x32xf32> to vector<64x32xf32>
    %c0_2 = arith.constant 0 : index
    %c0_3 = arith.constant 0 : index
    %2 = vector.load %arg3[%c0_2, %c0_3] : memref<32x32xf32, #tpu.memory_space<vmem>>, vector<32x32xf32>
    %cst = arith.constant dense<0.000000e+00> : vector<64x32xf32>
    %3 = tpu.matmul %1, %2, %cst {dimension_numbers = #tpu.dot_dimension_numbers<[1], [0], [0], [1], [0, 0, 1, 1], [], []>} : vector<64x32xf32>, vector<32x32xf32>, vector<64x32xf32> -> vector<64x32xf32>
    %c0_4 = arith.constant 0 : index
    %c0_5 = arith.constant 0 : index
    %4 = vector.load %arg2[%c0_4, %c0_5] : memref<8x32xf32, #tpu.memory_space<vmem>>, vector<8x32xf32>
    %c0_6 = arith.constant 0 : index
    %c0_7 = arith.constant 0 : index
    %5 = vector.load %arg4[%c0_6, %c0_7] : memref<32x32xf32, #tpu.memory_space<vmem>>, vector<32x32xf32>
    %cst_8 = arith.constant dense<0.000000e+00> : vector<8x32xf32>
    %6 = tpu.matmul %4, %5, %cst_8 {dimension_numbers = #tpu.dot_dimension_numbers<[1], [0], [0], [1], [0, 0, 1, 1], [], []>} : vector<8x32xf32>, vector<32x32xf32>, vector<8x32xf32> -> vector<8x32xf32>
    %c0_9 = arith.constant 0 : index
    %c0_10 = arith.constant 0 : index
    %7 = vector.load %arg5[%c0_9, %c0_10] : memref<1x32xf32, #tpu.memory_space<vmem>>, vector<1x32xf32>
    %8 = vector.broadcast %7 : vector<1x32xf32> to vector<8x32xf32>
    %9 = arith.addf %6, %8 : vector<8x32xf32>
    %10 = vector.shape_cast %3 : vector<64x32xf32> to vector<8x8x32xf32>
    %11 = vector.shape_cast %9 : vector<8x32xf32> to vector<1x8x32xf32>
    %12 = vector.broadcast %11 : vector<1x8x32xf32> to vector<8x8x32xf32>
    %13 = arith.addf %10, %12 : vector<8x8x32xf32>
    %cst_11 = arith.constant 0.000000e+00 : f32
    %14 = vector.broadcast %cst_11 : f32 to vector<8x8x32xf32>
    %15 = arith.maximumf %13, %14 : vector<8x8x32xf32>
    %c0_12 = arith.constant 0 : index
    %c0_13 = arith.constant 0 : index
    %16 = vector.load %arg6[%c0_12, %c0_13] : memref<1x32xf32, #tpu.memory_space<vmem>>, vector<1x32xf32>
    %17 = vector.shape_cast %16 : vector<1x32xf32> to vector<1x1x32xf32>
    %18 = vector.broadcast %17 : vector<1x1x32xf32> to vector<8x8x32xf32>
    %19 = arith.mulf %15, %18 : vector<8x8x32xf32>
    %cst_14 = arith.constant dense<0.000000e+00> : vector<8x8xf32>
    %20 = vector.multi_reduction <add>, %19, %cst_14 [2] : vector<8x8x32xf32> to vector<8x8xf32>
    %21 = tpu.transpose %20, [1, 0] : vector<8x8xf32> -> vector<8x8xf32>
    %cst_15 = arith.constant dense<0xFF800000> : vector<8xf32>
    %22 = vector.multi_reduction <maximumf>, %21, %cst_15 [1] : vector<8x8xf32> to vector<8xf32>
    %23 = vector.shape_cast %22 : vector<8xf32> to vector<8x1xf32>
    %24 = vector.broadcast %23 : vector<8x1xf32> to vector<8x8xf32>
    %25 = arith.subf %21, %24 : vector<8x8xf32>
    %26 = math.exp %25 : vector<8x8xf32>
    %cst_16 = arith.constant dense<0.000000e+00> : vector<8xf32>
    %27 = vector.multi_reduction <add>, %26, %cst_16 [1] : vector<8x8xf32> to vector<8xf32>
    %28 = vector.shape_cast %27 : vector<8xf32> to vector<8x1xf32>
    %29 = vector.broadcast %28 : vector<8x1xf32> to vector<8x8xf32>
    %30 = arith.divf %26, %29 : vector<8x8xf32>
    %c0_17 = arith.constant 0 : index
    %c0_18 = arith.constant 0 : index
    %31 = vector.load %arg7[%c0_17, %c0_18] : memref<8x8xf32, #tpu.memory_space<vmem>>, vector<8x8xf32>
    tpu.vector_store %arg7[%c0_17, %c0_18], %30 {strides = array<i32>} : memref<8x8xf32, #tpu.memory_space<vmem>>, vector<8x8xf32>,
    return
  }
  func.func @transform_0(%arg0: i32) -> (i32, i32, i32) {
    %c0_i32 = arith.constant 0 : i32
    %c0_i32_0 = arith.constant 0 : i32
    %c0_i32_1 = arith.constant 0 : i32
    return %c0_i32, %arg0, %c0_i32_0 : i32, i32, i32
  }
  func.func @transform_1(%arg0: i32) -> (i32, i32) {
    %c0_i32 = arith.constant 0 : i32
    %c0_i32_0 = arith.constant 0 : i32
    return %arg0, %c0_i32 : i32, i32
  }
  func.func @transform_2(%arg0: i32) -> (i32, i32) {
    %c0_i32 = arith.constant 0 : i32
    %c0_i32_0 = arith.constant 0 : i32
    %c0_i32_1 = arith.constant 0 : i32
    return %c0_i32, %c0_i32_0 : i32, i32
  }
  func.func @transform_3(%arg0: i32) -> (i32, i32) {
    %c0_i32 = arith.constant 0 : i32
    %c0_i32_0 = arith.constant 0 : i32
    %c0_i32_1 = arith.constant 0 : i32
    return %c0_i32, %c0_i32_0 : i32, i32
  }
  func.func @transform_4(%arg0: i32) -> (i32, i32) {
    %c0_i32 = arith.constant 0 : i32
    %c0_i32_0 = arith.constant 0 : i32
    %c0_i32_1 = arith.constant 0 : i32
    return %c0_i32, %c0_i32_0 : i32, i32
  }
  func.func @transform_5(%arg0: i32) -> (i32, i32) {
    %c0_i32 = arith.constant 0 : i32
    %c0_i32_0 = arith.constant 0 : i32
    %c0_i32_1 = arith.constant 0 : i32
    return %c0_i32, %c0_i32_0 : i32, i32
  }
  func.func @transform_6(%arg0: i32) -> (i32, i32) {
    %c0_i32 = arith.constant 0 : i32
    %c0_i32_0 = arith.constant 0 : i32
    return %arg0, %c0_i32 : i32, i32
  }
}

</mosaic_0001>

<llo_original>
// kernel: tpu_custom_call.1
$region0: #{tpu_custom_call.1}
  #allocation0 [shape = 'u32[]', space=smem, size = 0x4, offset = 0x4, fixed_abs, tag = 'smem constant byte address 0x4 - core index']
  #allocation1 [shape = 'u32[144,128]{1,0:T(1,128)}', space=vmem, size = 0x12000, scoped, tag = 'internal scratch']
  %s0 = inlined_call_operand.hbm [shape: f32[8,8,32], index: 0, kind: input, shape index: {}]
  %s1 = inlined_call_operand.hbm [shape: f32[8,32], index: 1, kind: input, shape index: {}]
  %s2 = inlined_call_operand.hbm [shape: f32[32,32], index: 2, kind: input, shape index: {}]
  %s3 = inlined_call_operand.hbm [shape: f32[32,32], index: 3, kind: input, shape index: {}]
  %s4 = inlined_call_operand.vmem [shape: f32[1,32], index: 4, kind: input, shape index: {}]
  %s5 = inlined_call_operand.vmem [shape: f32[1,32], index: 5, kind: input, shape index: {}]
  %s6 = inlined_call_operand.hbm [shape: f32[8,8], index: 6, kind: output, shape index: {}]
  %s7 = sld [smem:[#allocation0]]
  $region50: #{tpu_custom_call.1} parent=0
    _
  %s9 = ssub.s32 1, %s7
  %s10 = scalar_select 0, %s9, %s7
  $region1: #{tpu_custom_call.1} parent=0
    #allocation2 [shape = 'u8[32768]{0}', space=vmem, size = 0x8000, scoped, tag = 'input window, operand 0, single buffered']
    #allocation3 [shape = 's32[1]{0}', space=sflag, size = 0x4, scoped, tag = 'scoped memory for tpu_custom_call.1']
    #allocation4 [shape = 's32[1]{0}', space=sflag, size = 0x4, scoped, tag = 'scoped memory for tpu_custom_call.1']
    #allocation5 [shape = 'u8[4096]{0}', space=vmem, size = 0x1000, scoped, tag = 'input window, operand 1, single buffered']
    #allocation6 [shape = 's32[1]{0}', space=sflag, size = 0x4, scoped, tag = 'scoped memory for tpu_custom_call.1']
    #allocation7 [shape = 'u8[16384]{0}', space=vmem, size = 0x4000, scoped, tag = 'input window, operand 2, single buffered']
    #allocation8 [shape = 'u8[16384]{0}', space=vmem, size = 0x4000, scoped, tag = 'input window, operand 3, single buffered']
    #allocation9 [shape = 's32[1]{0}', space=sflag, size = 0x4, scoped, tag = 'scoped memory for tpu_custom_call.1']
    #allocation10 [shape = 'u8[4096]{0}', space=vmem, size = 0x1000, scoped, tag = 'output window, operand 0, single buffered']
    %11 = vsyncpa [#allocation3], 0
    %12 = vsyncpa [#allocation6], 0
    %13 = vsyncpa [#allocation9], 0
    %14 = vsyncpa [#allocation4], 0
    // Predicated region
    $region2: #{tpu_custom_call.1} parent=1 // pred_check
      _
    $region3: #{tpu_custom_call.1} parent=1 // pred_check_branch
      %16 = sbr.rel (0) target = $region5
    $region4: #{tpu_custom_call.1} parent=1 // pred_region
      %s18 = ssub.s32 1024, 1024
      %19 = vsyncadd [#allocation3], %s18
      %s20 = sshll.u32 [#allocation2], 4
      %s21 = int_to_ptr.vmem [resolvable:$true] %s20
      %26 = dma.hbm_to_vmem [thread:$0]  %s0, 1024, %s21, [#allocation3], 128, 128, 8
    $region5: #{tpu_custom_call.1} parent=1 // pred_fallthru
      _
    // Predicated region
    $region6: #{tpu_custom_call.1} parent=1 // pred_check
      _
    $region7: #{tpu_custom_call.1} parent=1 // pred_check_branch
      %28 = sbr.rel (0) target = $region9
    $region8: #{tpu_custom_call.1} parent=1 // pred_region
      %s30 = ssub.s32 128, 128
      %31 = vsyncadd [#allocation6], %s30
      %s33 = sshll.u32 [#allocation5], 4
      %s34 = int_to_ptr.vmem [resolvable:$true] %s33
      %36 = dma.hbm_to_vmem [thread:$0]  %s1, 128, %s34, [#allocation6]
    $region9: #{tpu_custom_call.1} parent=1 // pred_fallthru
      _
    // Predicated region
    $region10: #{tpu_custom_call.1} parent=1 // pred_check
      _
    $region11: #{tpu_custom_call.1} parent=1 // pred_check_branch
      %38 = sbr.rel (0) target = $region13
    $region12: #{tpu_custom_call.1} parent=1 // pred_region
      %s40 = ssub.s32 512, 512
      %41 = vsyncadd [#allocation6], %s40
      %s42 = sshll.u32 [#allocation7], 4
      %s43 = int_to_ptr.vmem [resolvable:$true] %s42
      %48 = dma.hbm_to_vmem [thread:$0]  %s2, 512, %s43, [#allocation6], 128, 128, 8
    $region13: #{tpu_custom_call.1} parent=1 // pred_fallthru
      _
    // Predicated region
    $region14: #{tpu_custom_call.1} parent=1 // pred_check
      _
    $region15: #{tpu_custom_call.1} parent=1 // pred_check_branch
      %50 = sbr.rel (0) target = $region17
    $region16: #{tpu_custom_call.1} parent=1 // pred_region
      %s52 = ssub.s32 512, 512
      %53 = vsyncadd [#allocation9], %s52
      %s54 = sshll.u32 [#allocation8], 4
      %s55 = int_to_ptr.vmem [resolvable:$true] %s54
      %60 = dma.hbm_to_vmem [thread:$0]  %s3, 512, %s55, [#allocation9], 128, 128, 8
    $region17: #{tpu_custom_call.1} parent=1 // pred_fallthru
      _
    // Predicated region
    $region18: #{tpu_custom_call.1} parent=1 // pred_check
      _
    $region19: #{tpu_custom_call.1} parent=1 // pred_check_branch
      %62 = sbr.rel (0) target = $region21
    $region20: #{tpu_custom_call.1} parent=1 // pred_region
      _
    $region21: #{tpu_custom_call.1} parent=1 // pred_fallthru
      _
    // Predicated region
    $region22: #{tpu_custom_call.1} parent=1 // pred_check
      _
    $region23: #{tpu_custom_call.1} parent=1 // pred_check_branch
      %64 = sbr.rel (0) target = $region25
    $region24: #{tpu_custom_call.1} parent=1 // pred_region
      _
    $region25: #{tpu_custom_call.1} parent=1 // pred_fallthru
      _
    // Predicated region
    $region26: #{tpu_custom_call.1} parent=1 // pred_check
      _
    $region27: #{tpu_custom_call.1} parent=1 // pred_check_branch
      %66 = sbr.rel (0) target = $region29
    $region28: #{tpu_custom_call.1} parent=1 // pred_region
      %67 = dma.done [#allocation3], 1024
    $region29: #{tpu_custom_call.1} parent=1 // pred_fallthru
      _
    // Predicated region
    $region30: #{tpu_custom_call.1} parent=1 // pred_check
      _
    $region31: #{tpu_custom_call.1} parent=1 // pred_check_branch
      %69 = sbr.rel (0) target = $region33
    $region32: #{tpu_custom_call.1} parent=1 // pred_region
      %70 = dma.done [#allocation6], 128
    $region33: #{tpu_custom_call.1} parent=1 // pred_fallthru
      _
    // Predicated region
    $region34: #{tpu_custom_call.1} parent=1 // pred_check
      _
    $region35: #{tpu_custom_call.1} parent=1 // pred_check_branch
      %72 = sbr.rel (0) target = $region37
    $region36: #{tpu_custom_call.1} parent=1 // pred_region
      %73 = dma.done [#allocation6], 512
    $region37: #{tpu_custom_call.1} parent=1 // pred_fallthru
      _
    // Predicated region
    $region38: #{tpu_custom_call.1} parent=1 // pred_check
      _
    $region39: #{tpu_custom_call.1} parent=1 // pred_check_branch
      %75 = sbr.rel (0) target = $region41
    $region40: #{tpu_custom_call.1} parent=1 // pred_region
      %76 = dma.done [#allocation9], 512
    $region41: #{tpu_custom_call.1} parent=1 // pred_fallthru
      _
    %v77 = vld [vmem:[#allocation2] sm:$0xff]
    %v78 = vld [vmem:[#allocation2 + $0x8] sm:$0xff]
    %v79 = vld [vmem:[#allocation2 + $0x10] sm:$0xff]
    %v80 = vld [vmem:[#allocation2 + $0x18] sm:$0xff]
    %v81 = vld [vmem:[#allocation2 + $0x20] sm:$0xff]
    %v82 = vld [vmem:[#allocation2 + $0x28] sm:$0xff]
    %v83 = vld [vmem:[#allocation2 + $0x30] sm:$0xff]
    %v84 = vld [vmem:[#allocation2 + $0x38] sm:$0xff]
    %v85 = vld [vmem:[#allocation7] sm:$0xff]
    %v86 = vld [vmem:[#allocation7 + $0x8] sm:$0xff]
    %v87 = vld [vmem:[#allocation7 + $0x10] sm:$0xff]
    %v88 = vld [vmem:[#allocation7 + $0x18] sm:$0xff]
    %vm89 = vcmask 261120
    %v91 = vsel %vm89, %v77, 0
    %v94 = vsel %vm89, %v78, 0
    %v97 = vsel %vm89, %v79, 0
    %v100 = vsel %vm89, %v80, 0
    %v103 = vsel %vm89, %v81, 0
    %v106 = vsel %vm89, %v82, 0
    %v109 = vsel %vm89, %v83, 0
    %v112 = vsel %vm89, %v84, 0
    %114 = vmatprep.subr.mxu0 0.0
    %115 = vmatpush1.msra.mxu0 %v85
    %116 = vmatprep.subr.mxu0 0.0
    %117 = vmatpush1.msra.mxu0 %v86
    %118 = vmatprep.subr.mxu0 0.0
    %119 = vmatpush1.msra.mxu0 %v87
    %120 = vmatprep.subr.mxu0 0.0
    %121 = vmatpush1.msra.mxu0 %v88
    %122 = vmatprep.subr.mxu0 0.0
    %123 = vmatpush1.msra.mxu0 0.0
    %124 = vmatprep.subr.mxu0 0.0
    %125 = vmatpush1.msra.mxu0 0.0
    %126 = vmatprep.subr.mxu0 0.0
    %127 = vmatpush1.msra.mxu0 0.0
    %128 = vmatprep.subr.mxu0 0.0
    %129 = vmatpush1.msra.mxu0 0.0
    %130 = vmatprep.subr.mxu0 0.0
    %131 = vmatpush1.msra.mxu0 0.0
    %132 = vmatprep.subr.mxu0 0.0
    %133 = vmatpush1.msra.mxu0 0.0
    %134 = vmatprep.subr.mxu0 0.0
    %135 = vmatpush1.msra.mxu0 0.0
    %136 = vmatprep.subr.mxu0 0.0
    %137 = vmatpush1.msra.mxu0 0.0
    %138 = vmatprep.subr.mxu0 0.0
    %139 = vmatpush1.msra.mxu0 0.0
    %140 = vmatprep.subr.mxu0 0.0
    %141 = vmatpush1.msra.mxu0 0.0
    %142 = vmatprep.subr.mxu0 0.0
    %143 = vmatpush1.msra.mxu0 0.0
    %144 = vmatprep.subr.mxu0 0.0
    %145 = vmatpush1.msra.mxu0 0.0
    %146 = vmatprep.subr.mxu0 0.0
    %147 = vmatpush1.msra.mxu0 0.0
    %148 = vmatprep.subr.mxu0 0.0
    %149 = vmatpush1.msra.mxu0 0.0
    %150 = vmatprep.subr.mxu0 0.0
    %151 = vmatpush1.msra.mxu0 0.0
    %152 = vmatprep.subr.mxu0 0.0
    %153 = vmatpush1.msra.mxu0 0.0
    %154 = vmatprep.subr.mxu0 0.0
    %155 = vmatpush1.msra.mxu0 0.0
    %156 = vmatprep.subr.mxu0 0.0
    %157 = vmatpush1.msra.mxu0 0.0
    %158 = vmatprep.subr.mxu0 0.0
    %159 = vmatpush1.msra.mxu0 0.0
    %160 = vmatprep.subr.mxu0 0.0
    %161 = vmatpush1.msra.mxu0 0.0
    %162 = vmatprep.subr.mxu0 0.0
    %163 = vmatpush1.msra.mxu0 0.0
    %164 = vmatprep.subr.mxu0 0.0
    %165 = vmatpush1.msra.mxu0 0.0
    %166 = vmatprep.subr.mxu0 0.0
    %167 = vmatpush1.msra.mxu0 0.0
    %168 = vmatprep.subr.mxu0 0.0
    %169 = vmatpush1.msra.mxu0 0.0
    %170 = vmatprep.subr.mxu0 0.0
    %171 = vmatpush1.msra.mxu0 0.0
    %172 = vmatprep.subr.mxu0 0.0
    %173 = vmatpush1.msra.mxu0 0.0
    %174 = vmatprep.subr.mxu0 0.0
    %175 = vmatpush1.msra.mxu0 0.0
    %176 = vmatprep.subr.mxu0 0.0
    %177 = vmatpush1.msra.mxu0 0.0
    %178 = vmatprep.mubr.f32.mxu0 0.0
    %179 = vmatmul.mubr.f32.gmra.mrb[0].mxu0 %v91
    %v180 = vpop.f32.mrb[0].mxu0
    %v181 = vadd.f32 0.0, %v180
    %v182 = vpop.f32.mrb[0].mxu0
    %183 = vmatprep.mubr.f32.mxu0 0.0
    %184 = vmatmul.mubr.f32.gmra.mrb[0].mxu0 %v94
    %v185 = vpop.f32.mrb[0].mxu0
    %v186 = vadd.f32 0.0, %v185
    %v187 = vpop.f32.mrb[0].mxu0
    %188 = vmatprep.mubr.f32.mxu0 0.0
    %189 = vmatmul.mubr.f32.gmra.mrb[0].mxu0 %v97
    %v190 = vpop.f32.mrb[0].mxu0
    %v191 = vadd.f32 0.0, %v190
    %v192 = vpop.f32.mrb[0].mxu0
    %193 = vmatprep.mubr.f32.mxu0 0.0
    %194 = vmatmul.mubr.f32.gmra.mrb[0].mxu0 %v100
    %v195 = vpop.f32.mrb[0].mxu0
    %v196 = vadd.f32 0.0, %v195
    %v197 = vpop.f32.mrb[0].mxu0
    %198 = vmatprep.mubr.f32.mxu0 0.0
    %199 = vmatmul.mubr.f32.gmra.mrb[0].mxu0 %v103
    %v200 = vpop.f32.mrb[0].mxu0
    %v201 = vadd.f32 0.0, %v200
    %v202 = vpop.f32.mrb[0].mxu0
    %203 = vmatprep.mubr.f32.mxu0 0.0
    %204 = vmatmul.mubr.f32.gmra.mrb[0].mxu0 %v106
    %v205 = vpop.f32.mrb[0].mxu0
    %v206 = vadd.f32 0.0, %v205
    %v207 = vpop.f32.mrb[0].mxu0
    %208 = vmatprep.mubr.f32.mxu0 0.0
    %209 = vmatmul.mubr.f32.gmra.mrb[0].mxu0 %v109
    %v210 = vpop.f32.mrb[0].mxu0
    %v211 = vadd.f32 0.0, %v210
    %v212 = vpop.f32.mrb[0].mxu0
    %213 = vmatprep.mubr.f32.mxu0 0.0
    %214 = vmatmul.mubr.f32.gmra.mrb[0].mxu0 %v112
    %v215 = vpop.f32.mrb[0].mxu0
    %v216 = vadd.f32 0.0, %v215
    %v217 = vpop.f32.mrb[0].mxu0
    %218 = vdwg.mxu0
    %v219 = vld [vmem:[#allocation5] sm:$0xff]
    %v220 = vld [vmem:[#allocation8] sm:$0xff]
    %v221 = vld [vmem:[#allocation8 + $0x8] sm:$0xff]
    %v222 = vld [vmem:[#allocation8 + $0x10] sm:$0xff]
    %v223 = vld [vmem:[#allocation8 + $0x18] sm:$0xff]
    %v224 = vld [vmem:[%s4] sm:$0x1]
    %v226 = vlaneseq
    %v227 = vshrl.u32 %v226, 7
    %v228 = vsub.s32 0, %v227
    %v229 = vrot.slane %v224, %v228
    %v232 = vsel %vm89, %v219, 0
    %234 = vmatprep.subr.mxu0 0.0
    %235 = vmatpush1.msra.mxu0 %v220
    %236 = vmatprep.subr.mxu0 0.0
    %237 = vmatpush1.msra.mxu0 %v221
    %238 = vmatprep.subr.mxu0 0.0
    %239 = vmatpush1.msra.mxu0 %v222
    %240 = vmatprep.subr.mxu0 0.0
    %241 = vmatpush1.msra.mxu0 %v223
    %242 = vmatprep.subr.mxu0 0.0
    %243 = vmatpush1.msra.mxu0 0.0
    %244 = vmatprep.subr.mxu0 0.0
    %245 = vmatpush1.msra.mxu0 0.0
    %246 = vmatprep.subr.mxu0 0.0
    %247 = vmatpush1.msra.mxu0 0.0
    %248 = vmatprep.subr.mxu0 0.0
    %249 = vmatpush1.msra.mxu0 0.0
    %250 = vmatprep.subr.mxu0 0.0
    %251 = vmatpush1.msra.mxu0 0.0
    %252 = vmatprep.subr.mxu0 0.0
    %253 = vmatpush1.msra.mxu0 0.0
    %254 = vmatprep.subr.mxu0 0.0
    %255 = vmatpush1.msra.mxu0 0.0
    %256 = vmatprep.subr.mxu0 0.0
    %257 = vmatpush1.msra.mxu0 0.0
    %258 = vmatprep.subr.mxu0 0.0
    %259 = vmatpush1.msra.mxu0 0.0
    %260 = vmatprep.subr.mxu0 0.0
    %261 = vmatpush1.msra.mxu0 0.0
    %262 = vmatprep.subr.mxu0 0.0
    %263 = vmatpush1.msra.mxu0 0.0
    %264 = vmatprep.subr.mxu0 0.0
    %265 = vmatpush1.msra.mxu0 0.0
    %266 = vmatprep.subr.mxu0 0.0
    %267 = vmatpush1.msra.mxu0 0.0
    %268 = vmatprep.subr.mxu0 0.0
    %269 = vmatpush1.msra.mxu0 0.0
    %270 = vmatprep.subr.mxu0 0.0
    %271 = vmatpush1.msra.mxu0 0.0
    %272 = vmatprep.subr.mxu0 0.0
    %273 = vmatpush1.msra.mxu0 0.0
    %274 = vmatprep.subr.mxu0 0.0
    %275 = vmatpush1.msra.mxu0 0.0
    %276 = vmatprep.subr.mxu0 0.0
    %277 = vmatpush1.msra.mxu0 0.0
    %278 = vmatprep.subr.mxu0 0.0
    %279 = vmatpush1.msra.mxu0 0.0
    %280 = vmatprep.subr.mxu0 0.0
    %281 = vmatpush1.msra.mxu0 0.0
    %282 = vmatprep.subr.mxu0 0.0
    %283 = vmatpush1.msra.mxu0 0.0
    %284 = vmatprep.subr.mxu0 0.0
    %285 = vmatpush1.msra.mxu0 0.0
    %286 = vmatprep.subr.mxu0 0.0
    %287 = vmatpush1.msra.mxu0 0.0
    %288 = vmatprep.subr.mxu0 0.0
    %289 = vmatpush1.msra.mxu0 0.0
    %290 = vmatprep.subr.mxu0 0.0
    %291 = vmatpush1.msra.mxu0 0.0
    %292 = vmatprep.subr.mxu0 0.0
    %293 = vmatpush1.msra.mxu0 0.0
    %294 = vmatprep.subr.mxu0 0.0
    %295 = vmatpush1.msra.mxu0 0.0
    %296 = vmatprep.subr.mxu0 0.0
    %297 = vmatpush1.msra.mxu0 0.0
    %298 = vmatprep.mubr.f32.mxu0 0.0
    %299 = vmatmul.mubr.f32.gmra.mrb[0].mxu0 %v232
    %v300 = vpop.f32.mrb[0].mxu0
    %v301 = vadd.f32 %v229, %v300
    %v302 = vpop.f32.mrb[0].mxu0
    %303 = vdwg.mxu0
    %v304 = vadd.f32 %v181, %v301
    %v305 = vadd.f32 %v186, %v301
    %v306 = vadd.f32 %v191, %v301
    %v307 = vadd.f32 %v196, %v301
    %v308 = vadd.f32 %v201, %v301
    %v309 = vadd.f32 %v206, %v301
    %v310 = vadd.f32 %v211, %v301
    %v311 = vadd.f32 %v216, %v301
    %v312 = vmax.f32 %v304, 0.0
    %v313 = vmax.f32 %v305, 0.0
    %v314 = vmax.f32 %v306, 0.0
    %v315 = vmax.f32 %v307, 0.0
    %v316 = vmax.f32 %v308, 0.0
    %v317 = vmax.f32 %v309, 0.0
    %v318 = vmax.f32 %v310, 0.0
    %v319 = vmax.f32 %v311, 0.0
    %v320 = vld [vmem:[%s5] sm:$0x1]
    %v322 = vlaneseq
    %v323 = vshrl.u32 %v322, 7
    %v324 = vsub.s32 0, %v323
    %v325 = vrot.slane %v320, %v324
    %v327 = vmul.f32 %v312, %v325
    %v328 = vmul.f32 %v313, %v325
    %v329 = vmul.f32 %v314, %v325
    %v330 = vmul.f32 %v315, %v325
    %v331 = vmul.f32 %v316, %v325
    %v332 = vmul.f32 %v317, %v325
    %v333 = vmul.f32 %v318, %v325
    %v334 = vmul.f32 %v319, %v325
    %v335 = vsel %vm89, %v327, 0.0
    %336 = vadd.xlane.f32.xlu0 %v335
    %v337 = vpop.xlane.xlu0 %336
    %v338 = vsel %vm89, %v328, 0.0
    %339 = vadd.xlane.f32.xlu0 %v338
    %v340 = vpop.xlane.xlu0 %339
    %v341 = vsel %vm89, %v329, 0.0
    %342 = vadd.xlane.f32.xlu0 %v341
    %v343 = vpop.xlane.xlu0 %342
    %v344 = vsel %vm89, %v330, 0.0
    %345 = vadd.xlane.f32.xlu0 %v344
    %v346 = vpop.xlane.xlu0 %345
    %v347 = vsel %vm89, %v331, 0.0
    %348 = vadd.xlane.f32.xlu0 %v347
    %v349 = vpop.xlane.xlu0 %348
    %v350 = vsel %vm89, %v332, 0.0
    %351 = vadd.xlane.f32.xlu0 %v350
    %v352 = vpop.xlane.xlu0 %351
    %v353 = vsel %vm89, %v333, 0.0
    %354 = vadd.xlane.f32.xlu0 %v353
    %v355 = vpop.xlane.xlu0 %354
    %v356 = vsel %vm89, %v334, 0.0
    %357 = vadd.xlane.f32.xlu0 %v356
    %v358 = vpop.xlane.xlu0 %357
    %v367 = vlaneseq
    %v368 = vand.u32 %v367, 127
    %v369 = vlaneseq
    %v370 = vshrl.u32 %v369, 7
    %v371 = vsub.s32 %v368, %v370
    %v372 = vrot.slane %v337, %v371
    %v373 = vlaneseq
    %v374 = vshrl.u32 %v373, 7
    %v375 = vsub.s32 %v368, %v374
    %v376 = vrot.slane %v340, %v375
    %v377 = vlaneseq
    %v378 = vshrl.u32 %v377, 7
    %v379 = vsub.s32 %v368, %v378
    %v380 = vrot.slane %v343, %v379
    %v381 = vlaneseq
    %v382 = vshrl.u32 %v381, 7
    %v383 = vsub.s32 %v368, %v382
    %v384 = vrot.slane %v346, %v383
    %v385 = vlaneseq
    %v386 = vshrl.u32 %v385, 7
    %v387 = vsub.s32 %v368, %v386
    %v388 = vrot.slane %v349, %v387
    %v389 = vlaneseq
    %v390 = vshrl.u32 %v389, 7
    %v391 = vsub.s32 %v368, %v390
    %v392 = vrot.slane %v352, %v391
    %v393 = vlaneseq
    %v394 = vshrl.u32 %v393, 7
    %v395 = vsub.s32 %v368, %v394
    %v396 = vrot.slane %v355, %v395
    %v397 = vlaneseq
    %v398 = vshrl.u32 %v397, 7
    %v399 = vsub.s32 %v368, %v398
    %v400 = vrot.slane %v358, %v399
    %vm401 = vcmask 1041409
    %v402 = vsel %vm401, %v376, %v372
    %vm403 = vcmask 1042434
    %v404 = vsel %vm403, %v380, %v402
    %vm405 = vcmask 1043459
    %v406 = vsel %vm405, %v384, %v404
    %vm407 = vcmask 1044484
    %v408 = vsel %vm407, %v388, %v406
    %vm409 = vcmask 1045509
    %v410 = vsel %vm409, %v392, %v408
    %vm411 = vcmask 1046534
    %v412 = vsel %vm411, %v396, %v410
    %vm413 = vcmask 1047559
    %v414 = vsel %vm413, %v400, %v412
    %416 = vxpose.xlu0.b32.start [1/16] %v414, 128
    %417 = vxpose.xlu0.b32.cont [2/16] 0.0, 128
    %418 = vxpose.xlu0.b32.cont [3/16] 0.0, 128
    %419 = vxpose.xlu0.b32.cont [4/16] 0.0, 128
    %420 = vxpose.xlu0.b32.cont [5/16] 0.0, 128
    %421 = vxpose.xlu0.b32.cont [6/16] 0.0, 128
    %422 = vxpose.xlu0.b32.cont [7/16] 0.0, 128
    %423 = vxpose.xlu0.b32.cont [8/16] 0.0, 128
    %424 = vxpose.xlu0.b32.cont [9/16] 0.0, 128
    %425 = vxpose.xlu0.b32.cont [10/16] 0.0, 128
    %426 = vxpose.xlu0.b32.cont [11/16] 0.0, 128
    %427 = vxpose.xlu0.b32.cont [12/16] 0.0, 128
    %428 = vxpose.xlu0.b32.cont [13/16] 0.0, 128
    %429 = vxpose.xlu0.b32.cont [14/16] 0.0, 128
    %430 = vxpose.xlu0.b32.cont [15/16] 0.0, 128
    %431 = vxpose.xlu0.b32.end [16/16] 0.0, 128
    %v432 = vpop.trf.xlu0
    %v433 = vpop.trf.xlu0
    %v434 = vpop.trf.xlu0
    %v435 = vpop.trf.xlu0
    %v436 = vpop.trf.xlu0
    %v437 = vpop.trf.xlu0
    %v438 = vpop.trf.xlu0
    %v439 = vpop.trf.xlu0
    %v440 = vpop.trf.xlu0
    %v441 = vpop.trf.xlu0
    %v442 = vpop.trf.xlu0
    %v443 = vpop.trf.xlu0
    %v444 = vpop.trf.xlu0
    %v445 = vpop.trf.xlu0
    %v446 = vpop.trf.xlu0
    %v447 = vpop.trf.xlu0
    %vm448 = vcmask 64512
    %v449 = vsel %vm448, %v432, -inf
    %450 = vmax.xlane.f32.xlu0 %v449
    %v451 = vpop.xlane.xlu0 %450
    %v452 = vsub.f32 %v432, %v451
    %v453 = vmul.f32 %v452, 1.442695
    %v454 = vpow.pop %v453
    %v455 = vsel %vm448, %v454, 0.0
    %456 = vadd.xlane.f32.xlu0 %v455
    %v457 = vpop.xlane.xlu0 %456
    %v458 = vrcp.pop %v457
    %v459 = vmul.f32 %v454, %v458
    %460 = vst.msk [vmem:[#allocation10] sm:$0xff] %vm448, %v459
    // Predicated region
    $region42: #{tpu_custom_call.1} parent=1 // pred_check
      _
    $region43: #{tpu_custom_call.1} parent=1 // pred_check_branch
      %462 = sbr.rel (0) target = $region45
    $region44: #{tpu_custom_call.1} parent=1 // pred_region
      %s464 = ssub.s32 128, 128
      %465 = vsyncadd [#allocation4], %s464
      %s467 = sshll.u32 [#allocation10], 4
      %s468 = int_to_ptr.vmem [resolvable:$true] %s467
      %470 = dma.vmem_to_hbm [thread:$0]  %s468, 128, %s6, [#allocation4]
    $region45: #{tpu_custom_call.1} parent=1 // pred_fallthru
      _
    // Predicated region
    $region46: #{tpu_custom_call.1} parent=1 // pred_check
      _
    $region47: #{tpu_custom_call.1} parent=1 // pred_check_branch
      %472 = sbr.rel (0) target = $region49
    $region48: #{tpu_custom_call.1} parent=1 // pred_region
      %473 = dma.done [#allocation4], 128
    $region49: #{tpu_custom_call.1} parent=1 // pred_fallthru
      _
    %474 = vsyncpa [#allocation3], 1
    %475 = vsyncpa [#allocation6], 1
    %476 = vsyncpa [#allocation9], 1
    %477 = vsyncpa [#allocation4], 1

</llo_original>
